<compile_context>
chip_gen: v7x
topology: tpu7x:2x2x1
jax: 0.10.0
libtpu: 0.0.40
codegen_flags: <defaults>
</compile_context>

<pallas_src>
import functools

import numpy as np

import jax
import jax.numpy as jnp
from jax.experimental import pallas as pl
from jax.experimental.pallas import tpu as pltpu

LN_EPS = 1e-5


def _round_up(x, m):
    return ((x + m - 1) // m) * m


def encoder_gru_kernel(
    x_ref,       # (TB, Dp)    bf16   input batch tile
    w_g_ref,     # (Dp, 3*Hp)  bf16   fused fc+GRU input weight (gate order r, z, n; z negated)
    b_g_ref,     # (1, 3*Hp)   f32    fused bias (b_fc@W_ih + b_ih; + b_hh for r, z; z negated)
    bhn_ref,     # (1, Hp)     f32    hidden bias of n gate (scaled by r)
    w_out_ref,   # (Hp, Dp)    bf16   output projection weight (gamma folded in)
    b_out_ref,   # (1, Dp)     f32    output projection bias (beta@w_out folded in)
    o_ref,       # (TB, Dp)    f32/bf16  output batch tile
    *, h_real, h_pad,
):
    # Fused fc + GRU input projection on the MXU (bf16 operands, f32 accumulate).
    gates = jnp.dot(x_ref[...], w_g_ref[...], preferred_element_type=jnp.float32)
    gates = gates + b_g_ref[...]

    H = h_pad  # multiple of 128 -> all gate slices are lane-tile aligned
    r = jax.nn.sigmoid(gates[:, 0:H])
    # z columns were sign-flipped at preprocess: sigmoid(-a) = 1 - sigmoid(a),
    # so zc == (1 - z) and the explicit subtract disappears.
    zc = jax.nn.sigmoid(gates[:, H:2 * H])
    n = jnp.tanh(gates[:, 2 * H:3 * H] + r * bhn_ref[...])
    h = zc * n  # == (1 - z) * n  (+ z * h0, h0 == 0)

    # LayerNorm statistics over the real model_dim; padded columns of h are exactly
    # zero (zero-padded n-gate weights/biases), so sums only need rescaling.
    # h is bounded in (-1, 1) so the one-pass E[h^2] - mean^2 form is safe in f32.
    inv_h = jnp.float32(1.0 / h_real)
    mean = jnp.sum(h, axis=-1, keepdims=True) * inv_h
    ex2 = jnp.sum(h * h, axis=-1, keepdims=True) * inv_h
    var = ex2 - mean * mean
    hn = (h - mean) * jax.lax.rsqrt(var + LN_EPS)
    # gamma/beta are folded into w_out/b_out; padded rows of w_out are zero, so
    # the nonzero padded columns of hn contribute nothing.

    # Output projection (dropout = identity at inference).
    # NOTE(v6e/v7x): if profiling shows the EUP binds for small Dp, the
    # sigmoid/tanh above can be evaluated on bf16 gates (keep f32 on v5e).
    y = jnp.dot(hn.astype(jnp.bfloat16), w_out_ref[...],
                preferred_element_type=jnp.float32)
    o_ref[...] = (y + b_out_ref[...]).astype(o_ref.dtype)


def preprocess_params(params, input_dim, model_dim):
    """One-time parameter folding / padding / casting (not per-call work)."""
    D, H = input_dim, model_dim
    Dp = _round_up(D, 128)
    Hp = _round_up(H, 128)

    w_fc, b_fc = params["w_fc"], params["b_fc"]      # (D, D), (1, D)
    w_ih, b_ih = params["w_ih"], params["b_ih"]      # (D, 3H), (1, 3H)
    b_hh = params["b_hh"]                            # (1, 3H)
    gamma, beta = params["gamma"], params["beta"]    # (1, H)
    w_out, b_out = params["w_out"], params["b_out"]  # (H, D), (1, D)

    # Fold fc into the GRU input projection: two back-to-back linears == one linear.
    w_comb = w_fc @ w_ih                              # (D, 3H)
    b_comb = b_fc @ w_ih + b_ih                       # (1, 3H)
    # Pre-add hidden biases for r and z; keep b_hn separate (multiplied by r).
    b_comb = b_comb.at[:, :2 * H].add(b_hh[:, :2 * H])
    b_hn = b_hh[:, 2 * H:]                            # (1, H)
    # Sign-flip the z gate so the kernel's sigmoid yields (1 - z) directly.
    w_comb = w_comb.at[:, H:2 * H].multiply(-1.0)
    b_comb = b_comb.at[:, H:2 * H].multiply(-1.0)

    # Fold the LayerNorm affine into the output projection (exact at inference).
    w_out_f = gamma.reshape(H, 1) * w_out             # diag(gamma) @ w_out, (H, D)
    b_out_f = beta @ w_out + b_out                    # (1, D)

    def pad_gates(a):  # (*, 3H) -> (*, 3*Hp), per-gate zero pad on the H axis
        a3 = a.reshape(a.shape[0], 3, H)
        a3 = jnp.pad(a3, ((0, 0), (0, 0), (0, Hp - H)))
        return a3.reshape(a.shape[0], 3 * Hp)

    w_g = jnp.pad(pad_gates(w_comb), ((0, Dp - D), (0, 0)))        # (Dp, 3Hp)
    b_g = pad_gates(b_comb)                                        # (1, 3Hp)
    b_hn_p = jnp.pad(b_hn, ((0, 0), (0, Hp - H)))                  # (1, Hp)
    w_out_p = jnp.pad(w_out_f, ((0, Hp - H), (0, Dp - D)))         # (Hp, Dp), pad rows zero
    b_out_p = jnp.pad(b_out_f, ((0, 0), (0, Dp - D)))              # (1, Dp)

    return {
        "w_g": w_g.astype(jnp.bfloat16),
        "b_g": b_g.astype(jnp.float32),
        "b_hn": b_hn_p.astype(jnp.float32),
        "w_out": w_out_p.astype(jnp.bfloat16),
        "b_out": b_out_p.astype(jnp.float32),
        "D": D, "H": H, "Dp": Dp, "Hp": Hp,
    }


def _resident_spec(shape):
    """VMEM-resident weight/bias: constant index_map, single-buffered if supported."""
    if hasattr(pl, "Buffered"):
        try:
            return pl.BlockSpec(shape, lambda i: (0, 0),
                                pipeline_mode=pl.Buffered(1))
        except TypeError:
            pass
    return pl.BlockSpec(shape, lambda i: (0, 0))


def encoder_gru_forward(x, pparams, *, tile_b=512, out_dtype=jnp.float32):
    """x: (B, input_dim) f32 -> (B, 1, input_dim) in out_dtype."""
    B, D = x.shape
    Dp, Hp, H = pparams["Dp"], pparams["Hp"], pparams["H"]
    out_isz = np.dtype(out_dtype).itemsize

    # ---- batch tile selection ----
    # Per-row VMEM cost: x (bf16, double-buffered) + out (double-buffered) +
    # f32 gates (3*Hp) + ~6 f32 (tb, Hp) intermediates.
    per_row = 2 * (Dp * 2) + 2 * (Dp * out_isz) + 3 * Hp * 4 + 6 * Hp * 4
    tb_vmem = max(16, ((24 << 20) // per_row) // 16 * 16)      # fit a ~24 MiB budget
    tb_steps = _round_up(max(pl.cdiv(B, 4), 16), 16)           # aim for >=4 grid steps
    tb = int(min(tile_b, tb_steps, tb_vmem))                   # multiple of 16 (bf16 pack)
    Bp = _round_up(B, tb)

    # ---- conditional wrapper-side padding (skip the extra HBM round trip) ----
    needs_pad = (Bp != B) or (Dp != D)
    if needs_pad:
        xp = jnp.pad(x, ((0, Bp - B), (0, Dp - D))).astype(jnp.bfloat16)
    else:
        xp = x.astype(jnp.bfloat16)

    # ---- VMEM limit: working set + headroom, never the full v7x 64 MiB ----
    resident_bytes = sum(int(pparams[k].size) * pparams[k].dtype.itemsize
                         for k in ("w_g", "b_g", "b_hn", "w_out", "b_out"))
    working_set = resident_bytes + tb * per_row
    vmem_limit = int(min(48 << 20, max(16 << 20, int(1.5 * working_set) + (4 << 20))))

    out = pl.pallas_call(
        functools.partial(encoder_gru_kernel, h_real=H, h_pad=Hp),
        out_shape=jax.ShapeDtypeStruct((Bp, Dp), out_dtype),
        grid=(Bp // tb,),
        in_specs=[
            pl.BlockSpec((tb, Dp), lambda i: (i, 0)),   # x streams over batch (double-buffered)
            _resident_spec((Dp, 3 * Hp)),
            _resident_spec((1, 3 * Hp)),
            _resident_spec((1, Hp)),
            _resident_spec((Hp, Dp)),
            _resident_spec((1, Dp)),
        ],
        out_specs=pl.BlockSpec((tb, Dp), lambda i: (i, 0)),
        compiler_params=pltpu.CompilerParams(
            dimension_semantics=("parallel",),          # megacore split on v7x
            vmem_limit_bytes=vmem_limit,
        ),
    )(xp, pparams["w_g"], pparams["b_g"], pparams["b_hn"],
      pparams["w_out"], pparams["b_out"])

    # strip padding (only if any), restore PyTorch output shape (B, 1, input_dim)
    if needs_pad:
        out = out[:B, :D]
    return out.reshape(B, 1, D)


def init_params(key, input_dim, model_dim):
    ks = jax.random.split(key, 8)
    s = 0.1
    return {
        # stored transposed relative to PyTorch (in, out) for row-major x @ W
        "w_fc":  s * jax.random.normal(ks[0], (input_dim, input_dim), jnp.float32),
        "b_fc":  s * jax.random.normal(ks[1], (1, input_dim), jnp.float32),
        "w_ih":  s * jax.random.normal(ks[2], (input_dim, 3 * model_dim), jnp.float32),
        "b_ih":  s * jax.random.normal(ks[3], (1, 3 * model_dim), jnp.float32),
        "b_hh":  s * jax.random.normal(ks[4], (1, 3 * model_dim), jnp.float32),
        "gamma": jnp.ones((1, model_dim), jnp.float32),
        "beta":  jnp.zeros((1, model_dim), jnp.float32),
        "w_out": s * jax.random.normal(ks[5], (model_dim, input_dim), jnp.float32),
        "b_out": s * jax.random.normal(ks[6], (1, input_dim), jnp.float32),
    }


def reference_forward(x, params):
    """Pure-JAX f32 reference of the original (unfolded) math."""
    H = params["gamma"].shape[1]
    xf = x @ params["w_fc"] + params["b_fc"]
    gates = xf @ params["w_ih"] + params["b_ih"]
    bhh = params["b_hh"]
    r = jax.nn.sigmoid(gates[:, 0:H] + bhh[:, 0:H])
    z = jax.nn.sigmoid(gates[:, H:2 * H] + bhh[:, H:2 * H])
    n = jnp.tanh(gates[:, 2 * H:3 * H] + r * bhh[:, 2 * H:3 * H])
    h = (1.0 - z) * n
    mean = jnp.mean(h, axis=-1, keepdims=True)
    var = jnp.mean((h - mean) ** 2, axis=-1, keepdims=True)
    hn = (h - mean) / jnp.sqrt(var + LN_EPS) * params["gamma"] + params["beta"]
    y = hn @ params["w_out"] + params["b_out"]
    return y.reshape(x.shape[0], 1, x.shape[1])


if __name__ == "__main__":
    B, input_dim, model_dim = 8, 16, 32
    dropout_p = 0.1  # identity at inference

    key = jax.random.PRNGKey(0)
    kx, kp = jax.random.split(key)
    x = jax.random.normal(kx, (B, input_dim), jnp.float32)
    params = init_params(kp, input_dim, model_dim)
    pparams = preprocess_params(params, input_dim, model_dim)

    out = encoder_gru_forward(x, pparams)
    out = jax.block_until_ready(out)

    ref = reference_forward(x, params)
    assert out.shape == (B, 1, input_dim)
    # bf16 weights + fc/GRU + LayerNorm-affine folding reassociate f32 rounding
    # -> looser tolerance than bit-exact.
    assert jnp.allclose(out, ref, atol=5e-2, rtol=5e-2), float(
        jnp.max(jnp.abs(out - ref)))

    print("KERNEL_OK")
</pallas_src>

<mosaic_0001>
module attributes {stable_mosaic.version = 11 : i64} {
  func.func @encoder_gru_kernel(%arg0: i32, %arg1: memref<16x128xbf16, #tpu.memory_space<vmem>>, %arg2: memref<128x384xbf16, #tpu.memory_space<vmem>>, %arg3: memref<1x384xf32, #tpu.memory_space<vmem>>, %arg4: memref<1x128xf32, #tpu.memory_space<vmem>>, %arg5: memref<128x128xbf16, #tpu.memory_space<vmem>>, %arg6: memref<1x128xf32, #tpu.memory_space<vmem>>, %arg7: memref<16x128xf32, #tpu.memory_space<vmem>>) attributes {dimension_semantics = [#tpu.dimension_semantics<parallel>], iteration_bounds = array<i64: 1>, scalar_prefetch = 0 : i64, scratch_operands = 0 : i64, tpu.core_type = #tpu.core_type<tc>, window_params = [{transform_indices = @transform_0, window_bounds = array<i64: 16, 128>}, {pipeline_mode = #tpu.pipeline_mode<synchronous>, transform_indices = @transform_1, window_bounds = array<i64: 128, 384>}, {pipeline_mode = #tpu.pipeline_mode<synchronous>, transform_indices = @transform_2, window_bounds = array<i64: 1, 384>}, {pipeline_mode = #tpu.pipeline_mode<synchronous>, transform_indices = @transform_3, window_bounds = array<i64: 1, 128>}, {pipeline_mode = #tpu.pipeline_mode<synchronous>, transform_indices = @transform_4, window_bounds = array<i64: 128, 128>}, {pipeline_mode = #tpu.pipeline_mode<synchronous>, transform_indices = @transform_5, window_bounds = array<i64: 1, 128>}, {transform_indices = @transform_6, window_bounds = array<i64: 16, 128>}]} {
    %c0 = arith.constant 0 : index
    %c0_0 = arith.constant 0 : index
    %0 = vector.load %arg1[%c0, %c0_0] : memref<16x128xbf16, #tpu.memory_space<vmem>>, vector<16x128xbf16>
    %c0_1 = arith.constant 0 : index
    %c0_2 = arith.constant 0 : index
    %1 = vector.load %arg2[%c0_1, %c0_2] : memref<128x384xbf16, #tpu.memory_space<vmem>>, vector<128x384xbf16>
    %cst = arith.constant dense<0.000000e+00> : vector<16x384xf32>
    %2 = tpu.matmul %0, %1, %cst {dimension_numbers = #tpu.dot_dimension_numbers<[1], [0], [0], [1], [0, 0, 1, 1], [], []>} : vector<16x128xbf16>, vector<128x384xbf16>, vector<16x384xf32> -> vector<16x384xf32>
    %c0_3 = arith.constant 0 : index
    %c0_4 = arith.constant 0 : index
    %3 = vector.load %arg3[%c0_3, %c0_4] : memref<1x384xf32, #tpu.memory_space<vmem>>, vector<1x384xf32>
    %4 = vector.broadcast %3 : vector<1x384xf32> to vector<16x384xf32>
    %5 = arith.addf %2, %4 : vector<16x384xf32>
    %6 = vector.extract_strided_slice %5 {offsets = [0, 0], sizes = [16, 128], strides = [1, 1]} : vector<16x384xf32> to vector<16x128xf32>
    %7 = arith.negf %6 : vector<16x128xf32>
    %8 = math.exp %7 : vector<16x128xf32>
    %cst_5 = arith.constant 1.000000e+00 : f32
    %9 = vector.broadcast %cst_5 : f32 to vector<16x128xf32>
    %10 = arith.addf %9, %8 : vector<16x128xf32>
    %11 = arith.divf %9, %10 : vector<16x128xf32>
    %12 = vector.extract_strided_slice %5 {offsets = [0, 128], sizes = [16, 128], strides = [1, 1]} : vector<16x384xf32> to vector<16x128xf32>
    %13 = arith.negf %12 : vector<16x128xf32>
    %14 = math.exp %13 : vector<16x128xf32>
    %cst_6 = arith.constant 1.000000e+00 : f32
    %15 = vector.broadcast %cst_6 : f32 to vector<16x128xf32>
    %16 = arith.addf %15, %14 : vector<16x128xf32>
    %17 = arith.divf %15, %16 : vector<16x128xf32>
    %18 = vector.extract_strided_slice %5 {offsets = [0, 256], sizes = [16, 128], strides = [1, 1]} : vector<16x384xf32> to vector<16x128xf32>
    %c0_7 = arith.constant 0 : index
    %c0_8 = arith.constant 0 : index
    %19 = vector.load %arg4[%c0_7, %c0_8] : memref<1x128xf32, #tpu.memory_space<vmem>>, vector<1x128xf32>
    %20 = vector.broadcast %19 : vector<1x128xf32> to vector<16x128xf32>
    %21 = arith.mulf %11, %20 : vector<16x128xf32>
    %22 = arith.addf %18, %21 : vector<16x128xf32>
    %23 = math.tanh %22 : vector<16x128xf32>
    %24 = arith.mulf %17, %23 : vector<16x128xf32>
    %cst_9 = arith.constant dense<0.000000e+00> : vector<16xf32>
    %25 = vector.multi_reduction <add>, %24, %cst_9 [1] : vector<16x128xf32> to vector<16xf32>
    %26 = vector.shape_cast %25 : vector<16xf32> to vector<16x1xf32>
    %cst_10 = arith.constant 3.125000e-02 : f32
    %27 = vector.broadcast %cst_10 : f32 to vector<16x1xf32>
    %28 = arith.mulf %26, %27 : vector<16x1xf32>
    %29 = arith.mulf %24, %24 : vector<16x128xf32>
    %cst_11 = arith.constant dense<0.000000e+00> : vector<16xf32>
    %30 = vector.multi_reduction <add>, %29, %cst_11 [1] : vector<16x128xf32> to vector<16xf32>
    %31 = vector.shape_cast %30 : vector<16xf32> to vector<16x1xf32>
    %cst_12 = arith.constant 3.125000e-02 : f32
    %32 = vector.broadcast %cst_12 : f32 to vector<16x1xf32>
    %33 = arith.mulf %31, %32 : vector<16x1xf32>
    %34 = arith.mulf %28, %28 : vector<16x1xf32>
    %35 = arith.subf %33, %34 : vector<16x1xf32>
    %36 = vector.broadcast %28 : vector<16x1xf32> to vector<16x128xf32>
    %37 = arith.subf %24, %36 : vector<16x128xf32>
    %cst_13 = arith.constant 9.99999974E-6 : f32
    %38 = vector.broadcast %cst_13 : f32 to vector<16x1xf32>
    %39 = arith.addf %35, %38 : vector<16x1xf32>
    %40 = math.rsqrt %39 : vector<16x1xf32>
    %41 = vector.broadcast %40 : vector<16x1xf32> to vector<16x128xf32>
    %42 = arith.mulf %37, %41 : vector<16x128xf32>
    %43 = arith.truncf %42 : vector<16x128xf32> to vector<16x128xbf16>
    %c0_14 = arith.constant 0 : index
    %c0_15 = arith.constant 0 : index
    %44 = vector.load %arg5[%c0_14, %c0_15] : memref<128x128xbf16, #tpu.memory_space<vmem>>, vector<128x128xbf16>
    %cst_16 = arith.constant dense<0.000000e+00> : vector<16x128xf32>
    %45 = tpu.matmul %43, %44, %cst_16 {dimension_numbers = #tpu.dot_dimension_numbers<[1], [0], [0], [1], [0, 0, 1, 1], [], []>} : vector<16x128xbf16>, vector<128x128xbf16>, vector<16x128xf32> -> vector<16x128xf32>
    %c0_17 = arith.constant 0 : index
    %c0_18 = arith.constant 0 : index
    %46 = vector.load %arg6[%c0_17, %c0_18] : memref<1x128xf32, #tpu.memory_space<vmem>>, vector<1x128xf32>
    %47 = vector.broadcast %46 : vector<1x128xf32> to vector<16x128xf32>
    %48 = arith.addf %45, %47 : vector<16x128xf32>
    %c0_19 = arith.constant 0 : index
    %c0_20 = arith.constant 0 : index
    %49 = vector.load %arg7[%c0_19, %c0_20] : memref<16x128xf32, #tpu.memory_space<vmem>>, vector<16x128xf32>
    tpu.vector_store %arg7[%c0_19, %c0_20], %48 {strides = array<i32>} : memref<16x128xf32, #tpu.memory_space<vmem>>, vector<16x128xf32>,
    return
  }
  func.func @transform_0(%arg0: i32) -> (i32, i32) {
    %c0_i32 = arith.constant 0 : i32
    %c0_i32_0 = arith.constant 0 : i32
    return %arg0, %c0_i32 : i32, i32
  }
  func.func @transform_1(%arg0: i32) -> (i32, i32) {
    %c0_i32 = arith.constant 0 : i32
    %c0_i32_0 = arith.constant 0 : i32
    %c0_i32_1 = arith.constant 0 : i32
    return %c0_i32, %c0_i32_0 : i32, i32
  }
  func.func @transform_2(%arg0: i32) -> (i32, i32) {
    %c0_i32 = arith.constant 0 : i32
    %c0_i32_0 = arith.constant 0 : i32
    %c0_i32_1 = arith.constant 0 : i32
    return %c0_i32, %c0_i32_0 : i32, i32
  }
  func.func @transform_3(%arg0: i32) -> (i32, i32) {
    %c0_i32 = arith.constant 0 : i32
    %c0_i32_0 = arith.constant 0 : i32
    %c0_i32_1 = arith.constant 0 : i32
    return %c0_i32, %c0_i32_0 : i32, i32
  }
  func.func @transform_4(%arg0: i32) -> (i32, i32) {
    %c0_i32 = arith.constant 0 : i32
    %c0_i32_0 = arith.constant 0 : i32
    %c0_i32_1 = arith.constant 0 : i32
    return %c0_i32, %c0_i32_0 : i32, i32
  }
  func.func @transform_5(%arg0: i32) -> (i32, i32) {
    %c0_i32 = arith.constant 0 : i32
    %c0_i32_0 = arith.constant 0 : i32
    %c0_i32_1 = arith.constant 0 : i32
    return %c0_i32, %c0_i32_0 : i32, i32
  }
  func.func @transform_6(%arg0: i32) -> (i32, i32) {
    %c0_i32 = arith.constant 0 : i32
    %c0_i32_0 = arith.constant 0 : i32
    return %arg0, %c0_i32 : i32, i32
  }
}

</mosaic_0001>

<llo_original>
// kernel: tpu_custom_call.1
$region0: #{tpu_custom_call.1}
  #allocation0 [shape = 'u32[]', space=smem, size = 0x4, offset = 0x4, fixed_abs, tag = 'smem constant byte address 0x4 - core index']
  #allocation1 [shape = 'u32[144,128]{1,0:T(1,128)}', space=vmem, size = 0x12000, scoped, tag = 'internal scratch']
  %s0 = inlined_call_operand.hbm [shape: bf16[16,128], index: 0, kind: input, shape index: {}]
  %s1 = inlined_call_operand.hbm [shape: bf16[128,384], index: 1, kind: input, shape index: {}]
  %s2 = inlined_call_operand.vmem [shape: f32[1,384], index: 2, kind: input, shape index: {}]
  %s3 = inlined_call_operand.vmem [shape: f32[1,128], index: 3, kind: input, shape index: {}]
  %s4 = inlined_call_operand.hbm [shape: bf16[128,128], index: 4, kind: input, shape index: {}]
  %s5 = inlined_call_operand.vmem [shape: f32[1,128], index: 5, kind: input, shape index: {}]
  %s6 = inlined_call_operand.hbm [shape: f32[16,128], index: 6, kind: output, shape index: {}]
  %s7 = sld [smem:[#allocation0]]
  $region46: #{tpu_custom_call.1} parent=0
    _
  %s9 = ssub.s32 1, %s7
  %s10 = scalar_select 0, %s9, %s7
  $region1: #{tpu_custom_call.1} parent=0
    #allocation2 [shape = 'u8[4096]{0}', space=vmem, size = 0x1000, scoped, tag = 'input window, operand 0, single buffered']
    #allocation3 [shape = 's32[1]{0}', space=sflag, size = 0x4, scoped, tag = 'scoped memory for tpu_custom_call.1']
    #allocation4 [shape = 's32[1]{0}', space=sflag, size = 0x4, scoped, tag = 'scoped memory for tpu_custom_call.1']
    #allocation5 [shape = 'u8[98304]{0}', space=vmem, size = 0x18000, scoped, tag = 'input window, operand 1, single buffered']
    #allocation6 [shape = 's32[1]{0}', space=sflag, size = 0x4, scoped, tag = 'scoped memory for tpu_custom_call.1']
    #allocation7 [shape = 'u8[32768]{0}', space=vmem, size = 0x8000, scoped, tag = 'input window, operand 4, single buffered']
    #allocation8 [shape = 'u8[8192]{0}', space=vmem, size = 0x2000, scoped, tag = 'output window, operand 0, single buffered']
    %11 = vsyncpa [#allocation3], 0
    %12 = vsyncpa [#allocation6], 0
    %13 = vsyncpa [#allocation4], 0
    // Predicated region
    $region2: #{tpu_custom_call.1} parent=1 // pred_check
      _
    $region3: #{tpu_custom_call.1} parent=1 // pred_check_branch
      %15 = sbr.rel (0) target = $region5
    $region4: #{tpu_custom_call.1} parent=1 // pred_region
      %s17 = ssub.s32 128, 128
      %18 = vsyncadd [#allocation3], %s17
      %s19 = sshll.u32 [#allocation2], 4
      %s20 = int_to_ptr.vmem [resolvable:$true] %s19
      %25 = dma.hbm_to_vmem [thread:$0]  %s0, 128, %s20, [#allocation3], 64, 64, 4
    $region5: #{tpu_custom_call.1} parent=1 // pred_fallthru
      _
    // Predicated region
    $region6: #{tpu_custom_call.1} parent=1 // pred_check
      _
    $region7: #{tpu_custom_call.1} parent=1 // pred_check_branch
      %27 = sbr.rel (0) target = $region9
    $region8: #{tpu_custom_call.1} parent=1 // pred_region
      %s29 = ssub.s32 3072, 3072
      %30 = vsyncadd [#allocation6], %s29
      %s31 = sshll.u32 [#allocation5], 4
      %s32 = int_to_ptr.vmem [resolvable:$true] %s31
      %37 = dma.hbm_to_vmem [thread:$0]  %s1, 3072, %s32, [#allocation6], 192, 192, 12
    $region9: #{tpu_custom_call.1} parent=1 // pred_fallthru
      _
    // Predicated region
    $region10: #{tpu_custom_call.1} parent=1 // pred_check
      _
    $region11: #{tpu_custom_call.1} parent=1 // pred_check_branch
      %39 = sbr.rel (0) target = $region13
    $region12: #{tpu_custom_call.1} parent=1 // pred_region
      _
    $region13: #{tpu_custom_call.1} parent=1 // pred_fallthru
      _
    // Predicated region
    $region14: #{tpu_custom_call.1} parent=1 // pred_check
      _
    $region15: #{tpu_custom_call.1} parent=1 // pred_check_branch
      %41 = sbr.rel (0) target = $region17
    $region16: #{tpu_custom_call.1} parent=1 // pred_region
      _
    $region17: #{tpu_custom_call.1} parent=1 // pred_fallthru
      _
    // Predicated region
    $region18: #{tpu_custom_call.1} parent=1 // pred_check
      _
    $region19: #{tpu_custom_call.1} parent=1 // pred_check_branch
      %43 = sbr.rel (0) target = $region21
    $region20: #{tpu_custom_call.1} parent=1 // pred_region
      %s45 = ssub.s32 1024, 1024
      %46 = vsyncadd [#allocation6], %s45
      %s47 = sshll.u32 [#allocation7], 4
      %s48 = int_to_ptr.vmem [resolvable:$true] %s47
      %53 = dma.hbm_to_vmem [thread:$0]  %s4, 1024, %s48, [#allocation6], 64, 64, 4
    $region21: #{tpu_custom_call.1} parent=1 // pred_fallthru
      _
    // Predicated region
    $region22: #{tpu_custom_call.1} parent=1 // pred_check
      _
    $region23: #{tpu_custom_call.1} parent=1 // pred_check_branch
      %55 = sbr.rel (0) target = $region25
    $region24: #{tpu_custom_call.1} parent=1 // pred_region
      _
    $region25: #{tpu_custom_call.1} parent=1 // pred_fallthru
      _
    // Predicated region
    $region26: #{tpu_custom_call.1} parent=1 // pred_check
      _
    $region27: #{tpu_custom_call.1} parent=1 // pred_check_branch
      %57 = sbr.rel (0) target = $region29
    $region28: #{tpu_custom_call.1} parent=1 // pred_region
      %58 = dma.done [#allocation3], 128
    $region29: #{tpu_custom_call.1} parent=1 // pred_fallthru
      _
    // Predicated region
    $region30: #{tpu_custom_call.1} parent=1 // pred_check
      _
    $region31: #{tpu_custom_call.1} parent=1 // pred_check_branch
      %60 = sbr.rel (0) target = $region33
    $region32: #{tpu_custom_call.1} parent=1 // pred_region
      %61 = dma.done [#allocation6], 3072
    $region33: #{tpu_custom_call.1} parent=1 // pred_fallthru
      _
    // Predicated region
    $region34: #{tpu_custom_call.1} parent=1 // pred_check
      _
    $region35: #{tpu_custom_call.1} parent=1 // pred_check_branch
      %63 = sbr.rel (0) target = $region37
    $region36: #{tpu_custom_call.1} parent=1 // pred_region
      %64 = dma.done [#allocation6], 1024
    $region37: #{tpu_custom_call.1} parent=1 // pred_fallthru
      _
    %v66 = vld [vmem:[#allocation2] sm:$0xf]
    %v67 = vld [vmem:[#allocation2 + $0x4] sm:$0xf]
    %v68 = vld [vmem:[#allocation5] sm:$0xff]
    %v69 = vld [vmem:[#allocation5 + $0x8] sm:$0xf]
    %v70 = vld [vmem:[#allocation5 + $0xc] sm:$0xff]
    %v71 = vld [vmem:[#allocation5 + $0x14] sm:$0xf]
    %v72 = vld [vmem:[#allocation5 + $0x18] sm:$0xff]
    %v73 = vld [vmem:[#allocation5 + $0x20] sm:$0xf]
    %v74 = vld [vmem:[#allocation5 + $0x24] sm:$0xff]
    %v75 = vld [vmem:[#allocation5 + $0x2c] sm:$0xf]
    %v76 = vld [vmem:[#allocation5 + $0x30] sm:$0xff]
    %v77 = vld [vmem:[#allocation5 + $0x38] sm:$0xf]
    %v78 = vld [vmem:[#allocation5 + $0x3c] sm:$0xff]
    %v79 = vld [vmem:[#allocation5 + $0x44] sm:$0xf]
    %v80 = vld [vmem:[#allocation5 + $0x48] sm:$0xff]
    %v81 = vld [vmem:[#allocation5 + $0x50] sm:$0xf]
    %v82 = vld [vmem:[#allocation5 + $0x54] sm:$0xff]
    %v83 = vld [vmem:[#allocation5 + $0x5c] sm:$0xf]
    %v84 = vld [vmem:[#allocation5 + $0x60] sm:$0xff]
    %v85 = vld [vmem:[#allocation5 + $0x68] sm:$0xf]
    %v86 = vld [vmem:[#allocation5 + $0x6c] sm:$0xff]
    %v87 = vld [vmem:[#allocation5 + $0x74] sm:$0xf]
    %v88 = vld [vmem:[#allocation5 + $0x78] sm:$0xff]
    %v89 = vld [vmem:[#allocation5 + $0x80] sm:$0xf]
    %v90 = vld [vmem:[#allocation5 + $0x84] sm:$0xff]
    %v91 = vld [vmem:[#allocation5 + $0x8c] sm:$0xf]
    %v92 = vld [vmem:[#allocation5 + $0x90] sm:$0xff]
    %v93 = vld [vmem:[#allocation5 + $0x98] sm:$0xf]
    %v94 = vld [vmem:[#allocation5 + $0x9c] sm:$0xff]
    %v95 = vld [vmem:[#allocation5 + $0xa4] sm:$0xf]
    %v96 = vld [vmem:[#allocation5 + $0xa8] sm:$0xff]
    %v97 = vld [vmem:[#allocation5 + $0xb0] sm:$0xf]
    %v98 = vld [vmem:[#allocation5 + $0xb4] sm:$0xff]
    %v99 = vld [vmem:[#allocation5 + $0xbc] sm:$0xf]
    %v100 = vld [vmem:[%s2] sm:$0x7]
    %v102 = vlaneseq
    %v103 = vshrl.u32 %v102, 7
    %v104 = vsub.s32 0, %v103
    %v105 = vrot.slane %v100, %v104
    %v106 = vlaneseq
    %v107 = vshrl.u32 %v106, 7
    %v108 = vsub.s32 1, %v107
    %v109 = vrot.slane %v100, %v108
    %v110 = vlaneseq
    %v111 = vshrl.u32 %v110, 7
    %v112 = vsub.s32 2, %v111
    %v113 = vrot.slane %v100, %v112
    %v119 = vunpack.c.l.b16 %v66
    %v120 = vunpack.c.l.b16 %v67
    %v121 = vpack.c.b16 %v120, %v119
    %v155 = vunpack.c.l.b16 %v68
    %v156 = vunpack.c.h.b16 %v68
    %v157 = vunpack.c.l.b16 %v69
    %v158 = vunpack.c.l.b16 %v70
    %v159 = vunpack.c.h.b16 %v70
    %v160 = vunpack.c.l.b16 %v71
    %v161 = vunpack.c.l.b16 %v72
    %v162 = vunpack.c.h.b16 %v72
    %v163 = vunpack.c.l.b16 %v73
    %v164 = vunpack.c.l.b16 %v74
    %v165 = vunpack.c.h.b16 %v74
    %v166 = vunpack.c.l.b16 %v75
    %v167 = vunpack.c.l.b16 %v76
    %v168 = vunpack.c.h.b16 %v76
    %v169 = vunpack.c.l.b16 %v77
    %v170 = vunpack.c.l.b16 %v78
    %v171 = vunpack.c.h.b16 %v78
    %v172 = vunpack.c.l.b16 %v79
    %v173 = vunpack.c.l.b16 %v80
    %v174 = vunpack.c.h.b16 %v80
    %v175 = vunpack.c.l.b16 %v81
    %v176 = vunpack.c.l.b16 %v82
    %v177 = vunpack.c.h.b16 %v82
    %v178 = vunpack.c.l.b16 %v83
    %v179 = vunpack.c.l.b16 %v84
    %v180 = vunpack.c.h.b16 %v84
    %v181 = vunpack.c.l.b16 %v85
    %v182 = vunpack.c.l.b16 %v86
    %v183 = vunpack.c.h.b16 %v86
    %v184 = vunpack.c.l.b16 %v87
    %v185 = vunpack.c.l.b16 %v88
    %v186 = vunpack.c.h.b16 %v88
    %v187 = vunpack.c.l.b16 %v89
    %v188 = vunpack.c.l.b16 %v90
    %v189 = vunpack.c.h.b16 %v90
    %v190 = vunpack.c.l.b16 %v91
    %v191 = vunpack.c.l.b16 %v92
    %v192 = vunpack.c.h.b16 %v92
    %v193 = vunpack.c.l.b16 %v93
    %v194 = vunpack.c.l.b16 %v94
    %v195 = vunpack.c.h.b16 %v94
    %v196 = vunpack.c.l.b16 %v95
    %v197 = vunpack.c.l.b16 %v96
    %v198 = vunpack.c.h.b16 %v96
    %v199 = vunpack.c.l.b16 %v97
    %v200 = vunpack.c.l.b16 %v98
    %v201 = vunpack.c.h.b16 %v98
    %v202 = vunpack.c.l.b16 %v99
    %v203 = vpack.c.b16 %v158, %v155
    %v204 = vpack.c.b16 %v159, %v156
    %v205 = vpack.c.b16 %v160, %v157
    %v206 = vpack.c.b16 %v164, %v161
    %v207 = vpack.c.b16 %v165, %v162
    %v208 = vpack.c.b16 %v166, %v163
    %v209 = vpack.c.b16 %v170, %v167
    %v210 = vpack.c.b16 %v171, %v168
    %v211 = vpack.c.b16 %v172, %v169
    %v212 = vpack.c.b16 %v176, %v173
    %v213 = vpack.c.b16 %v177, %v174
    %v214 = vpack.c.b16 %v178, %v175
    %v215 = vpack.c.b16 %v182, %v179
    %v216 = vpack.c.b16 %v183, %v180
    %v217 = vpack.c.b16 %v184, %v181
    %v218 = vpack.c.b16 %v188, %v185
    %v219 = vpack.c.b16 %v189, %v186
    %v220 = vpack.c.b16 %v190, %v187
    %v221 = vpack.c.b16 %v194, %v191
    %v222 = vpack.c.b16 %v195, %v192
    %v223 = vpack.c.b16 %v196, %v193
    %v224 = vpack.c.b16 %v200, %v197
    %v225 = vpack.c.b16 %v201, %v198
    %v226 = vpack.c.b16 %v202, %v199
    %251 = vmatprep.subr.bf16.mxu0 %v204
    %252 = vmatpush1.bf16.msra.mxu0 %v203
    %253 = vmatprep.subr.bf16.mxu0 %v207
    %254 = vmatpush1.bf16.msra.mxu0 %v206
    %255 = vmatprep.subr.bf16.mxu0 %v210
    %256 = vmatpush1.bf16.msra.mxu0 %v209
    %257 = vmatprep.subr.bf16.mxu0 %v213
    %258 = vmatpush1.bf16.msra.mxu0 %v212
    %259 = vmatprep.subr.bf16.mxu0 %v216
    %260 = vmatpush1.bf16.msra.mxu0 %v215
    %261 = vmatprep.subr.bf16.mxu0 %v219
    %262 = vmatpush1.bf16.msra.mxu0 %v218
    %263 = vmatprep.subr.bf16.mxu0 %v222
    %264 = vmatpush1.bf16.msra.mxu0 %v221
    %265 = vmatprep.subr.bf16.mxu0 %v225
    %266 = vmatpush1.bf16.msra.mxu0 %v224
    %267 = vmatprep.subr.bf16.mxu0 0
    %268 = vmatpush1.bf16.msra.mxu0 0
    %269 = vmatprep.subr.bf16.mxu0 0
    %270 = vmatpush1.bf16.msra.mxu0 0
    %271 = vmatprep.subr.bf16.mxu0 0
    %272 = vmatpush1.bf16.msra.mxu0 0
    %273 = vmatprep.subr.bf16.mxu0 0
    %274 = vmatpush1.bf16.msra.mxu0 0
    %275 = vmatprep.subr.bf16.mxu0 0
    %276 = vmatpush1.bf16.msra.mxu0 0
    %277 = vmatprep.subr.bf16.mxu0 0
    %278 = vmatpush1.bf16.msra.mxu0 0
    %279 = vmatprep.subr.bf16.mxu0 0
    %280 = vmatpush1.bf16.msra.mxu0 0
    %281 = vmatprep.subr.bf16.mxu0 0
    %282 = vmatpush1.bf16.msra.mxu0 0
    %283 = vmatprep.mubr.bf16.mxu0 0
    %284 = vmatmul.mubr.bf16.gmra.mrb[0].mxu0 %v121
    %v285 = vpop.f32.mrb[0].mxu0
    %v286 = vadd.f32 %v105, %v285
    %v287 = vpop.f32.mrb[0].mxu0
    %v288 = vadd.f32 %v109, %v287
    %v289 = vpop.f32.mrb[0].mxu0
    %v290 = vadd.f32 %v105, %v289
    %v291 = vpop.f32.mrb[0].mxu0
    %v292 = vadd.f32 %v109, %v291
    %293 = vdwg.mxu0
    %294 = vmatprep.subr.bf16.mxu0 0
    %295 = vmatpush1.bf16.msra.mxu0 %v205
    %296 = vmatprep.subr.bf16.mxu0 0
    %297 = vmatpush1.bf16.msra.mxu0 %v208
    %298 = vmatprep.subr.bf16.mxu0 0
    %299 = vmatpush1.bf16.msra.mxu0 %v211
    %300 = vmatprep.subr.bf16.mxu0 0
    %301 = vmatpush1.bf16.msra.mxu0 %v214
    %302 = vmatprep.subr.bf16.mxu0 0
    %303 = vmatpush1.bf16.msra.mxu0 %v217
    %304 = vmatprep.subr.bf16.mxu0 0
    %305 = vmatpush1.bf16.msra.mxu0 %v220
    %306 = vmatprep.subr.bf16.mxu0 0
    %307 = vmatpush1.bf16.msra.mxu0 %v223
    %308 = vmatprep.subr.bf16.mxu0 0
    %309 = vmatpush1.bf16.msra.mxu0 %v226
    %310 = vmatprep.subr.bf16.mxu0 0
    %311 = vmatpush1.bf16.msra.mxu0 0
    %312 = vmatprep.subr.bf16.mxu0 0
    %313 = vmatpush1.bf16.msra.mxu0 0
    %314 = vmatprep.subr.bf16.mxu0 0
    %315 = vmatpush1.bf16.msra.mxu0 0
    %316 = vmatprep.subr.bf16.mxu0 0
    %317 = vmatpush1.bf16.msra.mxu0 0
    %318 = vmatprep.subr.bf16.mxu0 0
    %319 = vmatpush1.bf16.msra.mxu0 0
    %320 = vmatprep.subr.bf16.mxu0 0
    %321 = vmatpush1.bf16.msra.mxu0 0
    %322 = vmatprep.subr.bf16.mxu0 0
    %323 = vmatpush1.bf16.msra.mxu0 0
    %324 = vmatprep.subr.bf16.mxu0 0
    %325 = vmatpush1.bf16.msra.mxu0 0
    %326 = vmatprep.mubr.bf16.mxu0 0
    %327 = vmatmul.mubr.bf16.gmra.mrb[0].mxu0 %v121
    %v328 = vpop.f32.mrb[0].mxu0
    %v329 = vadd.f32 %v113, %v328
    %v330 = vpop.f32.mrb[0].mxu0
    %v331 = vpop.f32.mrb[0].mxu0
    %v332 = vadd.f32 %v113, %v331
    %v333 = vpop.f32.mrb[0].mxu0
    %334 = vdwg.mxu0
    %v335 = vxor.u32 %v286, 2147483648
    %v336 = vxor.u32 %v290, 2147483648
    %v337 = vmul.f32 %v335, 1.442695
    %v338 = vpow.pop %v337
    %v339 = vmul.f32 %v336, 1.442695
    %v340 = vpow.pop %v339
    %v341 = vadd.f32 %v338, 1.0
    %v342 = vadd.f32 %v340, 1.0
    %v343 = vrcp.pop %v341
    %v344 = vmul.f32 1.0, %v343
    %v345 = vrcp.pop %v342
    %v346 = vmul.f32 1.0, %v345
    %v347 = vxor.u32 %v288, 2147483648
    %v348 = vxor.u32 %v292, 2147483648
    %v349 = vmul.f32 %v347, 1.442695
    %v350 = vpow.pop %v349
    %v351 = vmul.f32 %v348, 1.442695
    %v352 = vpow.pop %v351
    %v353 = vadd.f32 %v350, 1.0
    %v354 = vadd.f32 %v352, 1.0
    %v355 = vrcp.pop %v353
    %v356 = vmul.f32 1.0, %v355
    %v357 = vrcp.pop %v354
    %v358 = vmul.f32 1.0, %v357
    %v359 = vld [vmem:[%s3] sm:$0x1]
    %v361 = vlaneseq
    %v362 = vshrl.u32 %v361, 7
    %v363 = vsub.s32 0, %v362
    %v364 = vrot.slane %v359, %v363
    %v366 = vmul.f32 %v344, %v364
    %v367 = vmul.f32 %v346, %v364
    %v368 = vadd.f32 %v329, %v366
    %v369 = vadd.f32 %v332, %v367
    %v370 = vtanh.pop %v368
    %v371 = vtanh.pop %v369
    %v372 = vmul.f32 %v356, %v370
    %v373 = vmul.f32 %v358, %v371
    %374 = vadd.xlane.f32.xlu0 %v372
    %v375 = vpop.xlane.xlu0 %374
    %376 = vadd.xlane.f32.xlu0 %v373
    %v377 = vpop.xlane.xlu0 %376
    %v378 = vmul.f32 %v375, 0.03125
    %v379 = vmul.f32 %v377, 0.03125
    %v380 = vmul.f32 %v372, %v372
    %v381 = vmul.f32 %v373, %v373
    %382 = vadd.xlane.f32.xlu0 %v380
    %v383 = vpop.xlane.xlu0 %382
    %384 = vadd.xlane.f32.xlu0 %v381
    %v385 = vpop.xlane.xlu0 %384
    %v386 = vmul.f32 %v383, 0.03125
    %v387 = vmul.f32 %v385, 0.03125
    %v388 = vmul.f32 %v378, %v378
    %v389 = vmul.f32 %v379, %v379
    %v390 = vsub.f32 %v386, %v388
    %v391 = vsub.f32 %v387, %v389
    %v392 = vsub.f32 %v372, %v378
    %v393 = vsub.f32 %v373, %v379
    %v394 = vadd.f32 %v390, 1e-05
    %v395 = vadd.f32 %v391, 1e-05
    %v396 = vrsqrt.pop %v394
    %v397 = vrsqrt.pop %v395
    %v398 = vmul.f32 %v392, %v396
    %v399 = vmul.f32 %v393, %v397
    %v400 = vpack.c.bf16 %v399, %v398
    %v401 = vld [vmem:[#allocation7] sm:$0xf]
    %v402 = vld [vmem:[#allocation7 + $0x4] sm:$0xf]
    %v403 = vld [vmem:[#allocation7 + $0x8] sm:$0xf]
    %v404 = vld [vmem:[#allocation7 + $0xc] sm:$0xf]
    %v405 = vld [vmem:[#allocation7 + $0x10] sm:$0xf]
    %v406 = vld [vmem:[#allocation7 + $0x14] sm:$0xf]
    %v407 = vld [vmem:[#allocation7 + $0x18] sm:$0xf]
    %v408 = vld [vmem:[#allocation7 + $0x1c] sm:$0xf]
    %v409 = vld [vmem:[#allocation7 + $0x20] sm:$0xf]
    %v410 = vld [vmem:[#allocation7 + $0x24] sm:$0xf]
    %v411 = vld [vmem:[#allocation7 + $0x28] sm:$0xf]
    %v412 = vld [vmem:[#allocation7 + $0x2c] sm:$0xf]
    %v413 = vld [vmem:[#allocation7 + $0x30] sm:$0xf]
    %v414 = vld [vmem:[#allocation7 + $0x34] sm:$0xf]
    %v415 = vld [vmem:[#allocation7 + $0x38] sm:$0xf]
    %v416 = vld [vmem:[#allocation7 + $0x3c] sm:$0xf]
    %v417 = vld [vmem:[%s5] sm:$0x1]
    %v419 = vlaneseq
    %v420 = vshrl.u32 %v419, 7
    %v421 = vsub.s32 0, %v420
    %v422 = vrot.slane %v417, %v421
    %v440 = vunpack.c.l.b16 %v401
    %v441 = vunpack.c.l.b16 %v402
    %v442 = vunpack.c.l.b16 %v403
    %v443 = vunpack.c.l.b16 %v404
    %v444 = vunpack.c.l.b16 %v405
    %v445 = vunpack.c.l.b16 %v406
    %v446 = vunpack.c.l.b16 %v407
    %v447 = vunpack.c.l.b16 %v408
    %v448 = vunpack.c.l.b16 %v409
    %v449 = vunpack.c.l.b16 %v410
    %v450 = vunpack.c.l.b16 %v411
    %v451 = vunpack.c.l.b16 %v412
    %v452 = vunpack.c.l.b16 %v413
    %v453 = vunpack.c.l.b16 %v414
    %v454 = vunpack.c.l.b16 %v415
    %v455 = vunpack.c.l.b16 %v416
    %v456 = vpack.c.b16 %v441, %v440
    %v457 = vpack.c.b16 %v443, %v442
    %v458 = vpack.c.b16 %v445, %v444
    %v459 = vpack.c.b16 %v447, %v446
    %v460 = vpack.c.b16 %v449, %v448
    %v461 = vpack.c.b16 %v451, %v450
    %v462 = vpack.c.b16 %v453, %v452
    %v463 = vpack.c.b16 %v455, %v454
    %472 = vmatprep.subr.bf16.mxu0 0
    %473 = vmatpush1.bf16.msra.mxu0 %v456
    %474 = vmatprep.subr.bf16.mxu0 0
    %475 = vmatpush1.bf16.msra.mxu0 %v457
    %476 = vmatprep.subr.bf16.mxu0 0
    %477 = vmatpush1.bf16.msra.mxu0 %v458
    %478 = vmatprep.subr.bf16.mxu0 0
    %479 = vmatpush1.bf16.msra.mxu0 %v459
    %480 = vmatprep.subr.bf16.mxu0 0
    %481 = vmatpush1.bf16.msra.mxu0 %v460
    %482 = vmatprep.subr.bf16.mxu0 0
    %483 = vmatpush1.bf16.msra.mxu0 %v461
    %484 = vmatprep.subr.bf16.mxu0 0
    %485 = vmatpush1.bf16.msra.mxu0 %v462
    %486 = vmatprep.subr.bf16.mxu0 0
    %487 = vmatpush1.bf16.msra.mxu0 %v463
    %488 = vmatprep.subr.bf16.mxu0 0
    %489 = vmatpush1.bf16.msra.mxu0 0
    %490 = vmatprep.subr.bf16.mxu0 0
    %491 = vmatpush1.bf16.msra.mxu0 0
    %492 = vmatprep.subr.bf16.mxu0 0
    %493 = vmatpush1.bf16.msra.mxu0 0
    %494 = vmatprep.subr.bf16.mxu0 0
    %495 = vmatpush1.bf16.msra.mxu0 0
    %496 = vmatprep.subr.bf16.mxu0 0
    %497 = vmatpush1.bf16.msra.mxu0 0
    %498 = vmatprep.subr.bf16.mxu0 0
    %499 = vmatpush1.bf16.msra.mxu0 0
    %500 = vmatprep.subr.bf16.mxu0 0
    %501 = vmatpush1.bf16.msra.mxu0 0
    %502 = vmatprep.subr.bf16.mxu0 0
    %503 = vmatpush1.bf16.msra.mxu0 0
    %504 = vmatprep.mubr.bf16.mxu0 0
    %505 = vmatmul.mubr.bf16.gmra.mrb[0].mxu0 %v400
    %v506 = vpop.f32.mrb[0].mxu0
    %v507 = vadd.f32 %v422, %v506
    %v508 = vpop.f32.mrb[0].mxu0
    %v509 = vpop.f32.mrb[0].mxu0
    %v510 = vadd.f32 %v422, %v509
    %v511 = vpop.f32.mrb[0].mxu0
    %512 = vdwg.mxu0
    %513 = vst [vmem:[#allocation8] sm:$0xff] %v507
    %514 = vst [vmem:[#allocation8 + $0x8] sm:$0xff] %v510
    // Predicated region
    $region38: #{tpu_custom_call.1} parent=1 // pred_check
      _
    $region39: #{tpu_custom_call.1} parent=1 // pred_check_branch
      %516 = sbr.rel (0) target = $region41
    $region40: #{tpu_custom_call.1} parent=1 // pred_region
      %s518 = ssub.s32 256, 256
      %519 = vsyncadd [#allocation4], %s518
      %s520 = sshll.u32 [#allocation8], 4
      %s521 = int_to_ptr.vmem [resolvable:$true] %s520
      %526 = dma.vmem_to_hbm [thread:$0]  %s521, 256, %s6, [#allocation4], 128, 128, 8
    $region41: #{tpu_custom_call.1} parent=1 // pred_fallthru
      _
    // Predicated region
    $region42: #{tpu_custom_call.1} parent=1 // pred_check
      _
    $region43: #{tpu_custom_call.1} parent=1 // pred_check_branch
      %528 = sbr.rel (0) target = $region45
    $region44: #{tpu_custom_call.1} parent=1 // pred_region
      %529 = dma.done [#allocation4], 256
    $region45: #{tpu_custom_call.1} parent=1 // pred_fallthru
      _
    %530 = vsyncpa [#allocation3], 1
    %531 = vsyncpa [#allocation6], 1
    %532 = vsyncpa [#allocation4], 1

</llo_original>
